<compile_context>
chip_gen: v6e
topology: v6e:2x2x1
jax: 0.10.0
libtpu: 0.0.40
codegen_flags: <defaults>
</compile_context>

<pallas_src>
from functools import partial

import jax
import jax.numpy as jnp
import numpy as np
from jax import lax
from jax.experimental import pallas as pl
from jax.experimental.pallas import tpu as pltpu


# --------------------------------------------------------------------------- #
# Hardware-aware configuration
# --------------------------------------------------------------------------- #
def _vmem_capacity_bytes():
    try:
        return int(pltpu.get_tpu_info().vmem_capacity_bytes)
    except Exception:
        return 64 << 20            # conservative (v7x-sized) fallback


def _vmem_limit(block_bytes, n_buffers, ceiling):
    need = n_buffers * block_bytes + (8 << 20)
    return int(min(ceiling, max(32 << 20, need)))


def _sublane_multiple(itemsize):
    return {1: 32, 2: 16}.get(itemsize, 8)


# --------------------------------------------------------------------------- #
# Kernels
# --------------------------------------------------------------------------- #
def _eca_fused_kernel(w_ref, x_ref, o_ref, *, inv_hw, channels):
    # w_ref: SMEM (3,) f32 conv taps.  x_ref/o_ref: VMEM (rows, HW) blocks
    # where rows = bt * C (bt images per block).
    x = x_ref[...]
    rows = x.shape[0]

    # Global average pool over the spatial (lane) axis, accumulated in f32.
    m = jnp.sum(x.astype(jnp.float32), axis=-1, keepdims=True) * inv_hw   # (R,1)

    # k=3 / pad=1 cross-correlation along channels (sublane axis), zero padded.
    # Non-negative roll shifts: +1 brings m[c-1], rows-1 brings m[c+1] (mod R).
    # Channel index computed in-kernel (no extra HBM input stream).
    c = lax.broadcasted_iota(jnp.int32, (rows, 1), 0) % channels
    m_prev = jnp.where(c == 0, 0.0, pltpu.roll(m, 1, axis=0))
    m_next = jnp.where(c == channels - 1, 0.0, pltpu.roll(m, rows - 1, axis=0))
    conv = w_ref[0] * m_prev + w_ref[1] * m + w_ref[2] * m_next

    # Sigmoid gate; scale stays in the input dtype (no f32 upcast of the block).
    y = jax.nn.sigmoid(conv).astype(x.dtype)
    o_ref[...] = x * y


def _eca_gate_kernel(w_ref, x_ref, y_ref, acc_ref, *, inv_hw, channels, hw, tail):
    # Pass 1 of the tiled path.  Grid = (row_block, hw_tile); hw_tile is the
    # "arbitrary" reduction axis.  x_ref: (rows, thw); y_ref/acc_ref: (rows, 1).
    j = pl.program_id(1)

    @pl.when(j == 0)
    def _():
        acc_ref[...] = jnp.zeros_like(acc_ref)

    x = x_ref[...].astype(jnp.float32)
    if tail:
        thw = x.shape[1]
        col = j * thw + lax.broadcasted_iota(jnp.int32, x.shape, 1)
        x = jnp.where(col < hw, x, 0.0)          # mask the padded lane tail
    acc_ref[...] += jnp.sum(x, axis=-1, keepdims=True)

    @pl.when(j == pl.num_programs(1) - 1)
    def _():
        m = acc_ref[...] * inv_hw
        rows = m.shape[0]
        c = lax.broadcasted_iota(jnp.int32, (rows, 1), 0) % channels
        m_prev = jnp.where(c == 0, 0.0, pltpu.roll(m, 1, axis=0))
        m_next = jnp.where(c == channels - 1, 0.0,
                           pltpu.roll(m, rows - 1, axis=0))
        conv = w_ref[0] * m_prev + w_ref[1] * m + w_ref[2] * m_next
        y_ref[...] = jax.nn.sigmoid(conv)


def _eca_scale_kernel(y_ref, x_ref, o_ref):
    # Pass 2 of the tiled path: per-channel rescale of one (rows, thw) tile.
    o_ref[...] = x_ref[...] * y_ref[...].astype(o_ref.dtype)


# --------------------------------------------------------------------------- #
# Tiling heuristics
# --------------------------------------------------------------------------- #
def _pick_batch_tile(B, C, HW, itemsize, target_bytes, sub_mult,
                     prefer_multi_step):
    """Largest Bt (dividing B) whose (Bt*C, HW) block is <= target_bytes.
    Row counts must be 8-aligned (or the full B*C); dtype-packed row counts
    are preferred.  On multi-core (v7x-class) chips a >=2-step grid is
    preferred over a single full-size block."""
    per_image = C * HW * itemsize
    legal = [bt for bt in range(1, B + 1)
             if B % bt == 0 and ((bt * C) % 8 == 0 or bt == B)]
    packed = [bt for bt in legal if (bt * C) % sub_mult == 0 or bt == B]
    cands = packed if packed else legal
    fit = [bt for bt in cands if bt * per_image <= target_bytes]
    if not fit:
        return min(cands)
    if B > 1:
        multi = [bt for bt in fit if B // bt >= 2]
        if multi:
            if prefer_multi_step:
                return max(multi)
            if max(multi) * per_image >= min(target_bytes // 2, 1 << 20):
                return max(multi)
    return max(fit)


def _pick_hw_tile(HW, rows, itemsize, target_bytes):
    """Lane-aligned HW tile (multiple of 128, never larger than HW) sized so one
    (rows, thw) block is ~target_bytes.  Tiles need not divide HW: the grid uses
    cdiv + tail masking."""
    if HW <= 128:
        return HW                               # full extent (always legal)
    max_t = (HW // 128) * 128                   # keep blocks within the array
    t = (target_bytes // max(rows * itemsize, 1)) // 128 * 128
    return int(max(128, min(t, max_t)))


# --------------------------------------------------------------------------- #
# Forward wrapper
# --------------------------------------------------------------------------- #
def eca_forward(x, w, *, target_block_bytes=None, max_fused_image_bytes=None):
    """x: (B, C, H, W) NCHW.  w: Conv1d(1,1,3,bias=False) weights (3 taps)."""
    B, C, H, W = x.shape
    HW = H * W
    itemsize = jnp.dtype(x.dtype).itemsize
    per_image = C * HW * itemsize

    vmem_cap = _vmem_capacity_bytes()
    small_vmem = vmem_cap <= (64 << 20)               # v7x-class chip
    ceiling = max(32 << 20, vmem_cap - (8 << 20))     # never ask above physical
    if target_block_bytes is None:
        # ~4 MiB blocks on 3.2 TB/s / 64 MiB chips, ~2 MiB elsewhere.
        target_block_bytes = (4 << 20) if small_vmem else (2 << 20)
    if max_fused_image_bytes is None:
        max_fused_image_bytes = min(24 << 20, vmem_cap // 5)

    x2 = x.reshape(B * C, HW)                    # free reshape of NCHW
    w = jnp.asarray(w, jnp.float32).reshape(-1)  # (3,)
    sub_mult = _sublane_multiple(itemsize)

    bt = _pick_batch_tile(B, C, HW, itemsize, target_block_bytes, sub_mult,
                          prefer_multi_step=small_vmem)
    fused_block = bt * per_image
    use_fused = (per_image <= max_fused_image_bytes
                 and 4 * fused_block + (8 << 20) <= ceiling)

    if use_fused:
        # ------- fused single pass: 1 read + 1 write of x -------
        rows = bt * C
        out2 = pl.pallas_call(
            partial(_eca_fused_kernel, inv_hw=1.0 / HW, channels=C),
            out_shape=jax.ShapeDtypeStruct((B * C, HW), x.dtype),
            grid_spec=pltpu.PrefetchScalarGridSpec(
                num_scalar_prefetch=0,
                grid=(B // bt,),
                in_specs=[
                    pl.BlockSpec(memory_space=pltpu.MemorySpace.SMEM),   # w
                    pl.BlockSpec((rows, HW), lambda i: (i, 0)),          # x
                ],
                out_specs=pl.BlockSpec((rows, HW), lambda i: (i, 0)),
            ),
            compiler_params=pltpu.CompilerParams(
                dimension_semantics=("parallel",),
                vmem_limit_bytes=_vmem_limit(fused_block, 4, ceiling),
            ),
        )(w, x2)
        return out2.reshape(B, C, H, W)

    # ------- two-pass HW-tiled path for large feature maps -------
    rows_blk = C if C % 8 == 0 else B * C        # full-dim fallback is always legal
    nb = (B * C) // rows_blk
    thw1 = _pick_hw_tile(HW, rows_blk, itemsize, 2 * target_block_bytes)
    thw2 = _pick_hw_tile(HW, rows_blk, itemsize, target_block_bytes)
    nh1 = -(-HW // thw1)
    nh2 = -(-HW // thw2)
    tail1 = (nh1 * thw1 != HW)

    # Pass 1: GAP (accumulated over HW tiles) + conv + sigmoid -> gate (B*C, 1).
    gate = pl.pallas_call(
        partial(_eca_gate_kernel, inv_hw=1.0 / HW, channels=C, hw=HW, tail=tail1),
        out_shape=jax.ShapeDtypeStruct((B * C, 1), jnp.float32),
        grid_spec=pltpu.PrefetchScalarGridSpec(
            num_scalar_prefetch=0,
            grid=(nb, nh1),
            in_specs=[
                pl.BlockSpec(memory_space=pltpu.MemorySpace.SMEM),       # w
                pl.BlockSpec((rows_blk, thw1), lambda i, j: (i, j)),     # x tile
            ],
            out_specs=pl.BlockSpec((rows_blk, 1), lambda i, j: (i, 0)),
            scratch_shapes=[pltpu.VMEM((rows_blk, 1), jnp.float32)],
        ),
        compiler_params=pltpu.CompilerParams(
            dimension_semantics=("parallel", "arbitrary"),
            vmem_limit_bytes=_vmem_limit(rows_blk * thw1 * itemsize, 2, ceiling),
        ),
    )(w, x2)

    # Pass 2: per-channel rescale of x, tile by tile (both axes parallel).
    out2 = pl.pallas_call(
        _eca_scale_kernel,
        out_shape=jax.ShapeDtypeStruct((B * C, HW), x.dtype),
        grid_spec=pltpu.PrefetchScalarGridSpec(
            num_scalar_prefetch=0,
            grid=(nb, nh2),
            in_specs=[
                pl.BlockSpec((rows_blk, 1), lambda i, j: (i, 0)),        # gate
                pl.BlockSpec((rows_blk, thw2), lambda i, j: (i, j)),     # x tile
            ],
            out_specs=pl.BlockSpec((rows_blk, thw2), lambda i, j: (i, j)),
        ),
        compiler_params=pltpu.CompilerParams(
            dimension_semantics=("parallel", "parallel"),
            vmem_limit_bytes=_vmem_limit(rows_blk * thw2 * itemsize, 4, ceiling),
        ),
    )(gate, x2)
    return out2.reshape(B, C, H, W)


# --------------------------------------------------------------------------- #
# Pure-JAX reference (replicates the PyTorch forward exactly)
# --------------------------------------------------------------------------- #
def eca_reference(x, w):
    w = jnp.asarray(w, jnp.float32).reshape(-1)
    m = jnp.mean(x.astype(jnp.float32), axis=(2, 3))        # (B, C)
    mp = jnp.pad(m, ((0, 0), (1, 1)))                        # zero pad channels
    conv = w[0] * mp[:, :-2] + w[1] * mp[:, 1:-1] + w[2] * mp[:, 2:]
    y = jax.nn.sigmoid(conv)[:, :, None, None]
    return x * y.astype(x.dtype)


if __name__ == "__main__":
    key = jax.random.PRNGKey(0)
    kx, kw = jax.random.split(key)

    B, C, H, W = 2, 8, 16, 16
    x = jax.random.normal(kx, (B, C, H, W), dtype=jnp.float32)

    # Conv1d(1, 1, kernel_size=3, bias=False) weight: (1, 1, 3) in PyTorch.
    bound = 1.0 / np.sqrt(3.0)
    w = jax.random.uniform(kw, (3,), dtype=jnp.float32, minval=-bound, maxval=bound)

    ref = eca_reference(x, w)

    # Fused single-pass path (default, hardware-derived tiling).
    out = jax.block_until_ready(eca_forward(x, w))
    np.testing.assert_allclose(np.asarray(out), np.asarray(ref),
                               rtol=1e-5, atol=1e-5)

    # Fused path with multiple grid steps (forces bt=1 -> grid=(B,)).
    out_steps = jax.block_until_ready(
        eca_forward(x, w, target_block_bytes=C * H * W * 4))
    np.testing.assert_allclose(np.asarray(out_steps), np.asarray(ref),
                               rtol=1e-5, atol=1e-5)

    # Two-pass HW-tiled path (large-feature-map variant), forced on the small
    # test shape to validate the accumulator / gate / scale pipeline.
    out_tiled = jax.block_until_ready(
        eca_forward(x, w, max_fused_image_bytes=0))
    np.testing.assert_allclose(np.asarray(out_tiled), np.asarray(ref),
                               rtol=1e-5, atol=1e-5)

    # Tail-masked tiled path: HW = 13*13 = 169 is not a multiple of 128, so the
    # cdiv grid + lane masking (and output-write clipping in pass 2) is used.
    x3 = jax.random.normal(kx, (1, 16, 13, 13), dtype=jnp.float32)
    ref3 = eca_reference(x3, w)
    out3 = jax.block_until_ready(
        eca_forward(x3, w, target_block_bytes=8 * 1024, max_fused_image_bytes=0))
    np.testing.assert_allclose(np.asarray(out3), np.asarray(ref3),
                               rtol=1e-5, atol=1e-5)

    # bf16 fused path (dtype-aware sublane handling).
    xb = x.astype(jnp.bfloat16)
    refb = eca_reference(xb, w)
    outb = jax.block_until_ready(eca_forward(xb, w))
    np.testing.assert_allclose(np.asarray(outb, dtype=np.float32),
                               np.asarray(refb, dtype=np.float32),
                               rtol=2e-2, atol=2e-2)

    print("KERNEL_OK")
</pallas_src>

<mosaic_0001>
module attributes {stable_mosaic.version = 11 : i64} {
  func.func @_eca_fused_kernel(%arg0: i32, %arg1: memref<3xf32, #tpu.memory_space<smem>>, %arg2: memref<8x256xf32, #tpu.memory_space<vmem>>, %arg3: memref<8x256xf32, #tpu.memory_space<vmem>>) attributes {dimension_semantics = [#tpu.dimension_semantics<parallel>], iteration_bounds = array<i64: 2>, scalar_prefetch = 0 : i64, scratch_operands = 0 : i64, tpu.core_type = #tpu.core_type<tc>, window_params = [{transform_indices = @transform_0, window_bounds = array<i64: 3>}, {transform_indices = @transform_1, window_bounds = array<i64: 8, 256>}, {transform_indices = @transform_2, window_bounds = array<i64: 8, 256>}]} {
    %c0 = arith.constant 0 : index
    %c0_0 = arith.constant 0 : index
    %0 = vector.load %arg2[%c0, %c0_0] : memref<8x256xf32, #tpu.memory_space<vmem>>, vector<8x256xf32>
    %cst = arith.constant dense<0.000000e+00> : vector<8xf32>
    %1 = vector.multi_reduction <add>, %0, %cst [1] : vector<8x256xf32> to vector<8xf32>
    %2 = vector.shape_cast %1 : vector<8xf32> to vector<8x1xf32>
    %cst_1 = arith.constant 3.906250e-03 : f32
    %3 = vector.broadcast %cst_1 : f32 to vector<8x1xf32>
    %4 = arith.mulf %2, %3 : vector<8x1xf32>
    %5 = tpu.iota {dimensions = array<i32: 0>} : vector<8x1xi32>
    %c8_i32 = arith.constant 8 : i32
    %c0_i32 = arith.constant 0 : i32
    %6 = arith.cmpi eq, %c8_i32, %c0_i32 : i32
    %c1_i32 = arith.constant 1 : i32
    %7 = arith.select %6, %c1_i32, %c8_i32 : i32
    %8 = vector.broadcast %7 : i32 to vector<8x1xi32>
    %9 = arith.remsi %5, %8 : vector<8x1xi32>
    %c0_i32_2 = arith.constant 0 : i32
    %10 = vector.broadcast %c0_i32_2 : i32 to vector<8x1xi32>
    %11 = arith.cmpi ne, %9, %10 : vector<8x1xi32>
    %c0_i32_3 = arith.constant 0 : i32
    %12 = vector.broadcast %c0_i32_3 : i32 to vector<8x1xi32>
    %13 = arith.cmpi slt, %9, %12 : vector<8x1xi32>
    %c0_i32_4 = arith.constant 0 : i32
    %14 = arith.cmpi slt, %7, %c0_i32_4 : i32
    %15 = vector.broadcast %14 : i1 to vector<8x1xi1>
    %16 = vector.broadcast %15 : vector<8x1xi1> to vector<8x1xi1>
    %17 = arith.xori %13, %16 : vector<8x1xi1>
    %18 = arith.andi %17, %11 : vector<8x1xi1>
    %19 = vector.broadcast %7 : i32 to vector<8x1xi32>
    %20 = arith.addi %9, %19 : vector<8x1xi32>
    %21 = arith.select %18, %20, %9 : vector<8x1xi1>, vector<8x1xi32>
    %c0_i32_5 = arith.constant 0 : i32
    %22 = vector.broadcast %c0_i32_5 : i32 to vector<8x1xi32>
    %23 = arith.cmpi eq, %21, %22 : vector<8x1xi32>
    %c1_i32_6 = arith.constant 1 : i32
    %24 = tpu.dynamic_rotate %4 by %c1_i32_6 dim 0 : vector<8x1xf32>, i32 -> vector<8x1xf32>
    %cst_7 = arith.constant 0.000000e+00 : f32
    %25 = vector.broadcast %cst_7 : f32 to vector<8x1xf32>
    %26 = arith.select %23, %25, %24 : vector<8x1xi1>, vector<8x1xf32>
    %c7_i32 = arith.constant 7 : i32
    %27 = vector.broadcast %c7_i32 : i32 to vector<8x1xi32>
    %28 = arith.cmpi eq, %21, %27 : vector<8x1xi32>
    %c7_i32_8 = arith.constant 7 : i32
    %29 = tpu.dynamic_rotate %4 by %c7_i32_8 dim 0 : vector<8x1xf32>, i32 -> vector<8x1xf32>
    %cst_9 = arith.constant 0.000000e+00 : f32
    %30 = vector.broadcast %cst_9 : f32 to vector<8x1xf32>
    %31 = arith.select %28, %30, %29 : vector<8x1xi1>, vector<8x1xf32>
    %c0_10 = arith.constant 0 : index
    %32 = memref.load %arg1[%c0_10] : memref<3xf32, #tpu.memory_space<smem>>
    %33 = vector.broadcast %32 : f32 to vector<8x1xf32>
    %34 = arith.mulf %33, %26 : vector<8x1xf32>
    %c1 = arith.constant 1 : index
    %35 = memref.load %arg1[%c1] : memref<3xf32, #tpu.memory_space<smem>>
    %36 = vector.broadcast %35 : f32 to vector<8x1xf32>
    %37 = arith.mulf %36, %4 : vector<8x1xf32>
    %38 = arith.addf %34, %37 : vector<8x1xf32>
    %c2 = arith.constant 2 : index
    %39 = memref.load %arg1[%c2] : memref<3xf32, #tpu.memory_space<smem>>
    %40 = vector.broadcast %39 : f32 to vector<8x1xf32>
    %41 = arith.mulf %40, %31 : vector<8x1xf32>
    %42 = arith.addf %38, %41 : vector<8x1xf32>
    %43 = arith.negf %42 : vector<8x1xf32>
    %44 = math.exp %43 : vector<8x1xf32>
    %cst_11 = arith.constant 1.000000e+00 : f32
    %45 = vector.broadcast %cst_11 : f32 to vector<8x1xf32>
    %46 = arith.addf %45, %44 : vector<8x1xf32>
    %47 = arith.divf %45, %46 : vector<8x1xf32>
    %48 = vector.broadcast %47 : vector<8x1xf32> to vector<8x256xf32>
    %49 = arith.mulf %0, %48 : vector<8x256xf32>
    %c0_12 = arith.constant 0 : index
    %c0_13 = arith.constant 0 : index
    %50 = vector.load %arg3[%c0_12, %c0_13] : memref<8x256xf32, #tpu.memory_space<vmem>>, vector<8x256xf32>
    tpu.vector_store %arg3[%c0_12, %c0_13], %49 {strides = array<i32>} : memref<8x256xf32, #tpu.memory_space<vmem>>, vector<8x256xf32>,
    return
  }
  func.func @transform_0(%arg0: i32) -> i32 {
    %c0_i32 = arith.constant 0 : i32
    %c0_i32_0 = arith.constant 0 : i32
    return %c0_i32 : i32
  }
  func.func @transform_1(%arg0: i32) -> (i32, i32) {
    %c0_i32 = arith.constant 0 : i32
    %c0_i32_0 = arith.constant 0 : i32
    return %arg0, %c0_i32 : i32, i32
  }
  func.func @transform_2(%arg0: i32) -> (i32, i32) {
    %c0_i32 = arith.constant 0 : i32
    %c0_i32_0 = arith.constant 0 : i32
    return %arg0, %c0_i32 : i32, i32
  }
}

</mosaic_0001>

<llo_original>
// kernel: tpu_custom_call.1
$region0: #{tpu_custom_call.1}
  #allocation0 [shape = 'u32[]', space=smem, size = 0x4, offset = 0x4, fixed_abs, tag = 'smem constant byte address 0x4 - core index']
  #allocation1 [shape = 'u32[144,128]{1,0:T(1,128)}', space=vmem, size = 0x12000, scoped, tag = 'internal scratch']
  %s0 = inlined_call_operand.hbm [shape: f32[3], index: 0, kind: input, shape index: {}]
  %s1 = inlined_call_operand.hbm [shape: f32[16,256], index: 1, kind: input, shape index: {}]
  %s2 = inlined_call_operand.hbm [shape: f32[16,256], index: 2, kind: output, shape index: {}]
  %s3 = sld [smem:[#allocation0]]
  $region49: #{tpu_custom_call.1} parent=0
    _
  %s5 = ssub.s32 1, %s3
  %s6 = scalar_select 0, %s5, %s3
  $region1: #{tpu_custom_call.1} parent=0
    #allocation2 [shape = 'u8[512]{0}', space=smem, size = 0x200, scoped, tag = 'input window, operand 0, single buffered']
    #allocation3 [shape = 's32[2]{0}', space=sflag, size = 0x8, scoped, tag = 'scoped memory for tpu_custom_call.1']
    #allocation4 [shape = 's32[2]{0}', space=sflag, size = 0x8, scoped, tag = 'scoped memory for tpu_custom_call.1']
    #allocation5 [shape = 's32[2]{0}', space=sflag, size = 0x8, scoped, tag = 'scoped memory for tpu_custom_call.1']
    #allocation6 [shape = 'u8[16384]{0}', space=vmem, size = 0x4000, scoped, tag = 'input window, operand 1']
    #allocation7 [shape = 'u8[16384]{0}', space=vmem, size = 0x4000, scoped, tag = 'output window, operand 0']
    %7 = vsyncpa [#allocation5], 0
    %8 = vsyncpa [#allocation3], 0
    %s9 = scalar_lea.sflag [#allocation3], 1
    %10 = vsyncpa %s9, 0
    %11 = vsyncpa [#allocation4], 0
    %s12 = scalar_lea.sflag [#allocation4], 1
    %13 = vsyncpa %s12, 0
    loop: start=0, step=1, limit=4
    $region2: #{tpu_custom_call.1} parent=1 // loop_pre_header
      _
    $region3: #{tpu_custom_call.1} parent=1 // loop_header
      %s15 = sphi 0, %s19
      %p16 = scmp.ge.s32.totalorder %s15, 4
      %s23 = sphi 0, %s23
      %s25 = sphi 0, %s23
      %s26 = sphi 0, %s25
      %s40 = sphi 0, %s26
      %s46 = sphi 0, %s48
      %s49 = sphi 0, %s46
      %s50 = sphi 0, %s49
      %s66 = sphi 0, %s50
      %s72 = sphi 0, %s74
      %s75 = sphi 0, %s72
      %s76 = sphi 0, %s75
      %s92 = sphi 0, %s76
    $region4: #{tpu_custom_call.1} parent=1 // loop_header_branch
      %18 = sbr.rel (%p16) target = $region8
    $region5: #{tpu_custom_call.1} parent=1 // loop_body
      %s20 = ssub.s32 %s15, 1
      %s21 = ssub.s32 %s15, 2
      %s22 = sadd.s32 %s15, 1
      %s24 = sadd.s32 %s23, 1
      %p27 = scmp.eq.s32.totalorder %s15, 1
      %p28 = scmp.ne.s32.totalorder %s23, %s25
      %p29 = scmp.eq.s32.totalorder %s15, 0
      %p30 = por %p28, %p29
      %p31 = scmp.ne.s32.totalorder %s23, %s25
      %p32 = scmp.eq.s32.totalorder %s20, 1
      %p33 = por %p31, %p32
      %p34 = scmp.ne.s32.totalorder %s25, %s26
      %p35 = scmp.eq.s32.totalorder %s20, 0
      %p36 = por %p34, %p35
      %p37 = scmp.ne.s32.totalorder %s25, %s26
      %p38 = scmp.eq.s32.totalorder %s21, 1
      %p39 = por %p37, %p38
      %p41 = scmp.ne.s32.totalorder %s26, %s40
      %p42 = scmp.eq.s32.totalorder %s21, 0
      %p43 = por %p41, %p42
      %s44 = ssub.s32 %s15, %s22
      %p45 = scmp.eq.s32.totalorder %s44, 0
      %s47 = sadd.s32 %s46, 1
      %s48 = scalar_select %p45, %s46, %s47
      %p51 = pneg %p45
      %p52 = scmp.eq.s32.totalorder %s15, 1
      %p53 = por %p51, %p52
      %p54 = scmp.ne.s32.totalorder %s46, %s49
      %p55 = scmp.eq.s32.totalorder %s15, 0
      %p56 = por %p54, %p55
      %p57 = scmp.ne.s32.totalorder %s46, %s49
      %p58 = scmp.eq.s32.totalorder %s20, 1
      %p59 = por %p57, %p58
      %p60 = scmp.ne.s32.totalorder %s49, %s50
      %p61 = scmp.eq.s32.totalorder %s20, 0
      %p62 = por %p60, %p61
      %p63 = scmp.ne.s32.totalorder %s49, %s50
      %p64 = scmp.eq.s32.totalorder %s21, 1
      %p65 = por %p63, %p64
      %p67 = scmp.ne.s32.totalorder %s50, %s66
      %p68 = scmp.eq.s32.totalorder %s21, 0
      %p69 = por %p67, %p68
      %s70 = ssub.s32 %s15, %s22
      %p71 = scmp.eq.s32.totalorder %s70, 0
      %s73 = sadd.s32 %s72, 1
      %s74 = scalar_select %p71, %s72, %s73
      %p77 = pneg %p71
      %p78 = scmp.eq.s32.totalorder %s15, 1
      %p79 = por %p77, %p78
      %p80 = scmp.ne.s32.totalorder %s72, %s75
      %p81 = scmp.eq.s32.totalorder %s15, 0
      %p82 = por %p80, %p81
      %p83 = scmp.ne.s32.totalorder %s72, %s75
      %p84 = scmp.eq.s32.totalorder %s20, 1
      %p85 = por %p83, %p84
      %p86 = scmp.ne.s32.totalorder %s75, %s76
      %p87 = scmp.eq.s32.totalorder %s20, 0
      %p88 = por %p86, %p87
      %p89 = scmp.ne.s32.totalorder %s75, %s76
      %p90 = scmp.eq.s32.totalorder %s21, 1
      %p91 = por %p89, %p90
      %p93 = scmp.ne.s32.totalorder %s76, %s92
      %p94 = scmp.eq.s32.totalorder %s21, 0
      %p95 = por %p93, %p94
      %p96 = scmp.le.s32.totalorder 1, %s15
      %p97 = scmp.lt.s32.totalorder %s15, 3
      %p98 = pnand %p96, %p97
      %p99 = pneg %p98
      // Predicated region
      $region9: #{tpu_custom_call.1} parent=5 // pred_check
        _
      $region10: #{tpu_custom_call.1} parent=5 // pred_check_branch
        %101 = sbr.rel (%p98) target = $region12
      $region11: #{tpu_custom_call.1} parent=5 // pred_region
        %s102 = ssub.s32 %s15, 1
        // Predicated region
        $region13: #{tpu_custom_call.1} parent=11 // pred_check
          %p103 = pneg %p36
        $region14: #{tpu_custom_call.1} parent=11 // pred_check_branch
          %105 = sbr.rel (%p103) target = $region16
        $region15: #{tpu_custom_call.1} parent=11 // pred_region
          %s107 = ssub.s32 16, 16
          %108 = vsyncadd [#allocation5], %s107
          %111 = dma.hbm_to_smem %s0, 16, [#allocation2], [#allocation5]
        $region16: #{tpu_custom_call.1} parent=11 // pred_fallthru
          _
      $region12: #{tpu_custom_call.1} parent=5 // pred_fallthru
        _
      %p112 = scmp.lt.s32.totalorder %s15, 2
      // Predicated region
      $region17: #{tpu_custom_call.1} parent=5 // pred_check
        %p113 = pneg %p112
      $region18: #{tpu_custom_call.1} parent=5 // pred_check_branch
        %115 = sbr.rel (%p113) target = $region20
      $region19: #{tpu_custom_call.1} parent=5 // pred_region
        // Predicated region
        $region21: #{tpu_custom_call.1} parent=19 // pred_check
          %p116 = pneg %p56
        $region22: #{tpu_custom_call.1} parent=19 // pred_check_branch
          %118 = sbr.rel (%p116) target = $region24
        $region23: #{tpu_custom_call.1} parent=19 // pred_region
          %s119 = sand.u32 %s46, 1
          %s120 = scalar_lea.sflag [#allocation3], %s119
          %s121 = sand.u32 %s46, 1
          %s122 = smul.addr %s121, 16
          %s123 = scalar_lea.vmem [#allocation6], %s122
          %s125 = ssub.s32 256, 256
          %126 = vsyncadd %s120, %s125
          %s127 = smul.addr %s15, 2
          %s128 = smul.addr %s127, 128
          %s129 = scalar_lea.hbm %s1, %s128
          %s131 = sshll.u32 %s123, 4
          %s132 = int_to_ptr.vmem [resolvable:$true] %s131
          %134 = dma.hbm_to_vmem [thread:$0]  %s129, 256, %s132, %s120
        $region24: #{tpu_custom_call.1} parent=19 // pred_fallthru
          _
      $region20: #{tpu_custom_call.1} parent=5 // pred_fallthru
        _
      %p135 = scmp.le.s32.totalorder 1, %s15
      %p136 = scmp.lt.s32.totalorder %s15, 3
      %p137 = pnand %p135, %p136
      %p138 = pneg %p137
      // Predicated region
      $region25: #{tpu_custom_call.1} parent=5 // pred_check
        _
      $region26: #{tpu_custom_call.1} parent=5 // pred_check_branch
        %140 = sbr.rel (%p137) target = $region28
      $region27: #{tpu_custom_call.1} parent=5 // pred_region
        %s141 = ssub.s32 %s15, 1
        // Predicated region
        $region29: #{tpu_custom_call.1} parent=27 // pred_check
          %p142 = pneg %p36
        $region30: #{tpu_custom_call.1} parent=27 // pred_check_branch
          %144 = sbr.rel (%p142) target = $region32
        $region31: #{tpu_custom_call.1} parent=27 // pred_region
          %145 = dma.done [#allocation5], 16
        $region32: #{tpu_custom_call.1} parent=27 // pred_fallthru
          _
        %s146 = sand.u32 %s49, 1
        %s147 = scalar_lea.sflag [#allocation3], %s146
        %s148 = sand.u32 %s49, 1
        %s149 = smul.addr %s148, 16
        %s150 = scalar_lea.vmem [#allocation6], %s149
        // Predicated region
        $region33: #{tpu_custom_call.1} parent=27 // pred_check
          %p151 = pneg %p62
        $region34: #{tpu_custom_call.1} parent=27 // pred_check_branch
          %153 = sbr.rel (%p151) target = $region36
        $region35: #{tpu_custom_call.1} parent=27 // pred_region
          %154 = dma.done %s147, 256
        $region36: #{tpu_custom_call.1} parent=27 // pred_fallthru
          _
        %155 = sfence
        %p156 = pneg %p36
        %p157 = pneg %p33
        %s158 = sand.u32 %s49, 1
        %s159 = scalar_lea.sflag [#allocation3], %s158
        %s160 = sand.u32 %s49, 1
        %s161 = smul.addr %s160, 16
        %s162 = scalar_lea.vmem [#allocation6], %s161
        %p163 = pneg %p62
        %p164 = pneg %p59
        %p165 = pneg %p88
        %p166 = pneg %p85
        %s167 = sand.u32 %s75, 1
        %s168 = scalar_lea.sflag [#allocation4], %s167
        %s169 = sand.u32 %s75, 1
        %s170 = smul.addr %s169, 16
        %s171 = scalar_lea.vmem [#allocation7], %s170
        %v172 = vld [vmem:[%s150] sm:$0xff]
        %v173 = vld [vmem:[%s150 + $0x8] sm:$0xff]
        %v174 = vadd.f32 %v172, %v173
        %175 = vadd.xlane.f32.xlu0 %v174
        %v176 = vpop.xlane.xlu0 %175
        %v177 = vmul.f32 %v176, 0.00390625
        %v178 = vlaneseq
        %v179 = vshrl.u32 %v178, 7
        %vm180 = vcmp.lt.s32.totalorder %v179, 0
        %v181 = vsub.s32 0, %v179
        %v182 = vsel %vm180, %v181, %v179
        %v183 = vshrl.u32 %v182, 3
        %v184 = vand.u32 %v182, 7
        %v185 = vsub.s32 0, %v184
        %v186 = vsel %vm180, %v185, %v184
        %vm187 = vcmp.ne.s32.totalorder %v186, 0
        %vm188 = vcmp.lt.s32.totalorder %v186, 0
        %vm189 = vmand %vm188, %vm187
        %v190 = vadd.s32 %v186, 8
        %v191 = vsel %vm189, %v190, %v186
        %vm192 = vcmp.eq.s32.totalorder %v191, 0
        %v193 = vrot.slane %v177, 7
        %v194 = vsel %vm192, 0.0, %v193
        %vm195 = vcmp.eq.s32.totalorder %v191, 7
        %v196 = vrot.slane %v177, 1
        %v197 = vsel %vm195, 0.0, %v196
        %s198 = sld [smem:[#allocation2]]
        %v199 = vstv %s198
        %v200 = vmul.f32 %v199, %v194
        %s201 = sld [smem:[#allocation2 + $0x1]]
        %v202 = vstv %s201
        %v203 = vmul.f32 %v202, %v177
        %v204 = vadd.f32 %v200, %v203
        %s205 = sld [smem:[#allocation2 + $0x2]]
        %v206 = vstv %s205
        %v207 = vmul.f32 %v206, %v197
        %v208 = vadd.f32 %v204, %v207
        %v209 = vxor.u32 %v208, 2147483648
        %v210 = vmul.f32 %v209, 1.442695
        %v211 = vpow.pop %v210
        %v212 = vadd.f32 %v211, 1.0
        %v213 = vrcp.pop %v212
        %v214 = vmul.f32 1.0, %v213
        %216 = vset.pattern.permute.xlu0 0
        %217 = vperm.xlu0 %216, %v214
        %v218 = vpop.permute.xlu0 %217
        %v220 = vmul.f32 %v172, %v218
        %v221 = vmul.f32 %v173, %v218
        %222 = vst [vmem:[%s171] sm:$0xff] %v220
        %223 = vst [vmem:[%s171 + $0x8] sm:$0xff] %v221
        %s224 = sand.u32 %s75, 1
        %s225 = scalar_lea.sflag [#allocation4], %s224
        %s226 = sand.u32 %s75, 1
        %s227 = smul.addr %s226, 16
        %s228 = scalar_lea.vmem [#allocation7], %s227
        // Predicated region
        $region37: #{tpu_custom_call.1} parent=27 // pred_check
          %p229 = pneg %p85
        $region38: #{tpu_custom_call.1} parent=27 // pred_check_branch
          %231 = sbr.rel (%p229) target = $region40
        $region39: #{tpu_custom_call.1} parent=27 // pred_region
          %s233 = ssub.s32 256, 256
          %234 = vsyncadd %s225, %s233
          %s235 = smul.addr %s20, 2
          %s236 = smul.addr %s235, 128
          %s237 = scalar_lea.hbm %s2, %s236
          %s239 = sshll.u32 %s228, 4
          %s240 = int_to_ptr.vmem [resolvable:$true] %s239
          %242 = dma.vmem_to_hbm [thread:$0]  %s240, 256, %s237, %s225
        $region40: #{tpu_custom_call.1} parent=27 // pred_fallthru
          _
      $region28: #{tpu_custom_call.1} parent=5 // pred_fallthru
        _
      %p243 = scmp.le.s32.totalorder 2, %s15
      // Predicated region
      $region41: #{tpu_custom_call.1} parent=5 // pred_check
        %p244 = pneg %p243
      $region42: #{tpu_custom_call.1} parent=5 // pred_check_branch
        %246 = sbr.rel (%p244) target = $region44
      $region43: #{tpu_custom_call.1} parent=5 // pred_region
        %s247 = ssub.s32 %s15, 2
        // Predicated region
        $region45: #{tpu_custom_call.1} parent=43 // pred_check
          %p248 = pneg %p91
        $region46: #{tpu_custom_call.1} parent=43 // pred_check_branch
          %250 = sbr.rel (%p248) target = $region48
        $region47: #{tpu_custom_call.1} parent=43 // pred_region
          %s251 = sand.u32 %s76, 1
          %s252 = scalar_lea.sflag [#allocation4], %s251
          %s253 = sand.u32 %s76, 1
          %s254 = smul.addr %s253, 16
          %s255 = scalar_lea.vmem [#allocation7], %s254
          %256 = dma.done %s252, 256
        $region48: #{tpu_custom_call.1} parent=43 // pred_fallthru
          _
      $region44: #{tpu_custom_call.1} parent=5 // pred_fallthru
        _
    $region6: #{tpu_custom_call.1} parent=1 // loop_footer
      %s19 = sadd.s32 1, %s15
    $region7: #{tpu_custom_call.1} parent=1 // loop_footer_branch
      %14 = sbr.rel target = $region3
    $region8: #{tpu_custom_call.1} parent=1 // loop_exit
      _
    %257 = vsyncpa [#allocation3], 1
    %s258 = scalar_lea.sflag [#allocation3], 1
    %259 = vsyncpa %s258, 1
    %260 = vsyncpa [#allocation4], 1
    %s261 = scalar_lea.sflag [#allocation4], 1
    %262 = vsyncpa %s261, 1
    %263 = vsyncpa [#allocation5], 1
    %s264 = scalar_lea.sflag [#allocation5], 1
    %265 = vsyncpa %s264, 1

</llo_original>
